<compile_context>
chip_gen: v5e
topology: v5e:2x2
jax: 0.10.0
libtpu: 0.0.40
codegen_flags: <defaults>
</compile_context>

<pallas_src>
import jax
import jax.numpy as jnp
from jax.experimental import pallas as pl
from jax.experimental.pallas import tpu as pltpu

_LANE = 128     # f32 lane tiling unit (last dim)
_SUBLANE = 8    # f32 sublane tiling unit (second-to-last dim)


def _round_up(x, m):
    return (x + m - 1) // m * m


def _make_fused_mlp_kernel(n_layers):
    """Kernel body: chain of (W^T @ h -> +b -> sigmoid), feature-major, fully
    resident in vregs/VMEM.  Only row 0 of the last (sublane-padded) layer is
    stored -> single lane-dense (1, tm) HBM write per grid step."""

    def kernel(*refs):
        x_ref, o_ref = refs[0], refs[-1]
        wb_refs = refs[1:-1]
        h = x_ref[...]                                   # (d_in, tm), batch on lanes
        for l in range(n_layers):                        # static trip count
            wt = wb_refs[2 * l][...]                     # (d_out_pad, d_in_l), VMEM-resident
            b = wb_refs[2 * l + 1][...]                  # (d_out_pad, 1), lane-broadcast
            z = jnp.dot(wt, h, preferred_element_type=jnp.float32) + b   # MXU + VPU
            h = 0.5 * jnp.tanh(0.5 * z) + 0.5            # sigmoid as ONE EUP op
        o_ref[...] = h[0:1, :].astype(o_ref.dtype)       # row 0 = real output, lane-dense
    return kernel


def mlp_forward(params, x, *, tm_max=2048):
    """Pallas-backed fused forward. Returns shape (N,) like the PyTorch module."""
    N, d_in = x.shape
    n_layers = len(params)

    # --- batch tiling: lane-aligned (multiple of 128), <= tm_max per step ------
    n_pad128 = _round_up(max(N, 1), _LANE)
    tm = min(_round_up(tm_max, _LANE), n_pad128)
    if tm == n_pad128 and n_pad128 >= 2 * _LANE:
        # Keep >= 2 grid steps so megacore (v7x) has work for both TensorCores.
        tm = _round_up(pl.cdiv(n_pad128, 2), _LANE)
    n_pad = _round_up(n_pad128, tm)

    # Feature-major input: (d_in, n_pad); padded batch columns are discarded.
    x_t = jnp.pad(x.astype(jnp.float32).T, ((0, 0), (0, n_pad - N)))

    # --- weights: transpose once; sublane-pad the 1-wide last layer to 8 rows --
    # Zero-padded rows/bias compute sigmoid(0)=0.5 and are dropped in-kernel;
    # row 0 is exact.
    wb = []
    for li, (w, b) in enumerate(params):
        wt = w.astype(jnp.float32).T                     # (d_out, d_in)
        bt = b.astype(jnp.float32).T                     # (d_out, 1)
        if li == n_layers - 1:
            pad_r = _SUBLANE - wt.shape[0]
            wt = jnp.pad(wt, ((0, pad_r), (0, 0)))
            bt = jnp.pad(bt, ((0, pad_r), (0, 0)))
        wb.append((wt, bt))

    in_specs = [pl.BlockSpec((d_in, tm), lambda i: (0, i))]   # activation stream
    flat_wb = []
    for (wt, bt) in wb:
        # Constant index_map -> DMA'd once, resident in VMEM across all tiles.
        in_specs.append(pl.BlockSpec(wt.shape, lambda i: (0, 0)))
        in_specs.append(pl.BlockSpec(bt.shape, lambda i: (0, 0)))
        flat_wb += [wt, bt]

    # Advisory cost estimate (per padded batch element).
    flops = 2 * n_pad * sum(int(w.shape[0]) * int(w.shape[1]) for w, _ in params)
    transcendentals = n_pad * sum(int(w.shape[1]) for w, _ in params)
    bytes_accessed = 4 * (n_pad * d_in + n_pad
                          + sum(int(w.size) + int(b.size) for w, b in params))

    out = pl.pallas_call(
        _make_fused_mlp_kernel(n_layers),
        out_shape=jax.ShapeDtypeStruct((1, n_pad), jnp.float32),
        grid=(n_pad // tm,),
        in_specs=in_specs,
        out_specs=pl.BlockSpec((1, tm), lambda i: (0, i)),    # lane-dense store
        compiler_params=pltpu.CompilerParams(
            dimension_semantics=("parallel",)),               # megacore on v7x
        cost_estimate=pl.CostEstimate(
            flops=flops, transcendentals=transcendentals,
            bytes_accessed=bytes_accessed),
    )(x_t, *flat_wb)

    return out[0, :N]                                         # .view(N)


def make_mlp_params(key, n_in, n_hidden, n_layers, winit_sd):
    """Deterministic init mirroring MLP.reset(): W, b ~ Normal(0, winit_sd)."""
    n_out = 1
    if n_layers == 1:
        dims = [(n_in, n_out)]
    else:
        units = [n_in] + (n_layers - 1) * [n_hidden] + [n_out]
        dims = list(zip(units[:-1], units[1:]))
    params = []
    for (d_in, d_out) in dims:
        key, kw, kb = jax.random.split(key, 3)
        w = winit_sd * jax.random.normal(kw, (d_in, d_out), dtype=jnp.float32)
        b = winit_sd * jax.random.normal(kb, (1, d_out), dtype=jnp.float32)
        params.append((w, b))
    return params


def mlp_forward_ref(params, x):
    """Pure-JAX reference for correctness check."""
    h = x.astype(jnp.float32)
    for (w, b) in params:
        h = jax.nn.sigmoid(h @ w + b)
    return h.reshape(h.shape[0])


if __name__ == "__main__":
    n_in, n_hidden, n_layers, winit_sd = 8, 32, 3, 0.1
    batch = 2

    key = jax.random.PRNGKey(0)
    key_x, key_p = jax.random.split(key)
    x = jax.random.normal(key_x, (batch, n_in), dtype=jnp.float32)
    params = make_mlp_params(key_p, n_in, n_hidden, n_layers, winit_sd)

    out = jax.block_until_ready(mlp_forward(params, x))
    ref = jax.block_until_ready(mlp_forward_ref(params, x))

    assert out.shape == (batch,)
    assert jnp.allclose(out, ref, atol=1e-5, rtol=1e-5)

    # Also exercise the single-layer (n_layers == 1) code path.
    params1 = make_mlp_params(key_p, n_in, n_hidden, 1, winit_sd)
    out1 = jax.block_until_ready(mlp_forward(params1, x))
    ref1 = jax.block_until_ready(mlp_forward_ref(params1, x))
    assert out1.shape == (batch,)
    assert jnp.allclose(out1, ref1, atol=1e-5, rtol=1e-5)

    print("KERNEL_OK")
</pallas_src>

<mosaic_0001>
module attributes {stable_mosaic.version = 11 : i64} {
  func.func @kernel(%arg0: i32, %arg1: memref<8x128xf32, #tpu.memory_space<vmem>>, %arg2: memref<32x8xf32, #tpu.memory_space<vmem>>, %arg3: memref<32x1xf32, #tpu.memory_space<vmem>>, %arg4: memref<32x32xf32, #tpu.memory_space<vmem>>, %arg5: memref<32x1xf32, #tpu.memory_space<vmem>>, %arg6: memref<8x32xf32, #tpu.memory_space<vmem>>, %arg7: memref<8x1xf32, #tpu.memory_space<vmem>>, %arg8: memref<1x128xf32, #tpu.memory_space<vmem>>) attributes {dimension_semantics = [#tpu.dimension_semantics<parallel>], iteration_bounds = array<i64: 1>, scalar_prefetch = 0 : i64, scratch_operands = 0 : i64, tpu.core_type = #tpu.core_type<tc>, window_params = [{transform_indices = @transform_0, window_bounds = array<i64: 8, 128>}, {pipeline_mode = #tpu.pipeline_mode<synchronous>, transform_indices = @transform_1, window_bounds = array<i64: 32, 8>}, {pipeline_mode = #tpu.pipeline_mode<synchronous>, transform_indices = @transform_2, window_bounds = array<i64: 32, 1>}, {pipeline_mode = #tpu.pipeline_mode<synchronous>, transform_indices = @transform_3, window_bounds = array<i64: 32, 32>}, {pipeline_mode = #tpu.pipeline_mode<synchronous>, transform_indices = @transform_4, window_bounds = array<i64: 32, 1>}, {pipeline_mode = #tpu.pipeline_mode<synchronous>, transform_indices = @transform_5, window_bounds = array<i64: 8, 32>}, {pipeline_mode = #tpu.pipeline_mode<synchronous>, transform_indices = @transform_6, window_bounds = array<i64: 8, 1>}, {transform_indices = @transform_7, window_bounds = array<i64: 1, 128>}]} {
    %c0 = arith.constant 0 : index
    %c0_0 = arith.constant 0 : index
    %0 = vector.load %arg1[%c0, %c0_0] : memref<8x128xf32, #tpu.memory_space<vmem>>, vector<8x128xf32>
    %c0_1 = arith.constant 0 : index
    %c0_2 = arith.constant 0 : index
    %1 = vector.load %arg2[%c0_1, %c0_2] : memref<32x8xf32, #tpu.memory_space<vmem>>, vector<32x8xf32>
    %c0_3 = arith.constant 0 : index
    %c0_4 = arith.constant 0 : index
    %2 = vector.load %arg3[%c0_3, %c0_4] : memref<32x1xf32, #tpu.memory_space<vmem>>, vector<32x1xf32>
    %cst = arith.constant dense<0.000000e+00> : vector<32x128xf32>
    %3 = tpu.matmul %1, %0, %cst {dimension_numbers = #tpu.dot_dimension_numbers<[1], [0], [0], [1], [0, 0, 1, 1], [], []>} : vector<32x8xf32>, vector<8x128xf32>, vector<32x128xf32> -> vector<32x128xf32>
    %4 = vector.broadcast %2 : vector<32x1xf32> to vector<32x128xf32>
    %5 = arith.addf %3, %4 : vector<32x128xf32>
    %cst_5 = arith.constant 5.000000e-01 : f32
    %6 = vector.broadcast %cst_5 : f32 to vector<32x128xf32>
    %7 = arith.mulf %6, %5 : vector<32x128xf32>
    %8 = math.tanh %7 : vector<32x128xf32>
    %cst_6 = arith.constant 5.000000e-01 : f32
    %9 = vector.broadcast %cst_6 : f32 to vector<32x128xf32>
    %10 = arith.mulf %9, %8 : vector<32x128xf32>
    %cst_7 = arith.constant 5.000000e-01 : f32
    %11 = vector.broadcast %cst_7 : f32 to vector<32x128xf32>
    %12 = arith.addf %10, %11 : vector<32x128xf32>
    %c0_8 = arith.constant 0 : index
    %c0_9 = arith.constant 0 : index
    %13 = vector.load %arg4[%c0_8, %c0_9] : memref<32x32xf32, #tpu.memory_space<vmem>>, vector<32x32xf32>
    %c0_10 = arith.constant 0 : index
    %c0_11 = arith.constant 0 : index
    %14 = vector.load %arg5[%c0_10, %c0_11] : memref<32x1xf32, #tpu.memory_space<vmem>>, vector<32x1xf32>
    %cst_12 = arith.constant dense<0.000000e+00> : vector<32x128xf32>
    %15 = tpu.matmul %13, %12, %cst_12 {dimension_numbers = #tpu.dot_dimension_numbers<[1], [0], [0], [1], [0, 0, 1, 1], [], []>} : vector<32x32xf32>, vector<32x128xf32>, vector<32x128xf32> -> vector<32x128xf32>
    %16 = vector.broadcast %14 : vector<32x1xf32> to vector<32x128xf32>
    %17 = arith.addf %15, %16 : vector<32x128xf32>
    %cst_13 = arith.constant 5.000000e-01 : f32
    %18 = vector.broadcast %cst_13 : f32 to vector<32x128xf32>
    %19 = arith.mulf %18, %17 : vector<32x128xf32>
    %20 = math.tanh %19 : vector<32x128xf32>
    %cst_14 = arith.constant 5.000000e-01 : f32
    %21 = vector.broadcast %cst_14 : f32 to vector<32x128xf32>
    %22 = arith.mulf %21, %20 : vector<32x128xf32>
    %cst_15 = arith.constant 5.000000e-01 : f32
    %23 = vector.broadcast %cst_15 : f32 to vector<32x128xf32>
    %24 = arith.addf %22, %23 : vector<32x128xf32>
    %c0_16 = arith.constant 0 : index
    %c0_17 = arith.constant 0 : index
    %25 = vector.load %arg6[%c0_16, %c0_17] : memref<8x32xf32, #tpu.memory_space<vmem>>, vector<8x32xf32>
    %c0_18 = arith.constant 0 : index
    %c0_19 = arith.constant 0 : index
    %26 = vector.load %arg7[%c0_18, %c0_19] : memref<8x1xf32, #tpu.memory_space<vmem>>, vector<8x1xf32>
    %cst_20 = arith.constant dense<0.000000e+00> : vector<8x128xf32>
    %27 = tpu.matmul %25, %24, %cst_20 {dimension_numbers = #tpu.dot_dimension_numbers<[1], [0], [0], [1], [0, 0, 1, 1], [], []>} : vector<8x32xf32>, vector<32x128xf32>, vector<8x128xf32> -> vector<8x128xf32>
    %28 = vector.broadcast %26 : vector<8x1xf32> to vector<8x128xf32>
    %29 = arith.addf %27, %28 : vector<8x128xf32>
    %cst_21 = arith.constant 5.000000e-01 : f32
    %30 = vector.broadcast %cst_21 : f32 to vector<8x128xf32>
    %31 = arith.mulf %30, %29 : vector<8x128xf32>
    %32 = math.tanh %31 : vector<8x128xf32>
    %cst_22 = arith.constant 5.000000e-01 : f32
    %33 = vector.broadcast %cst_22 : f32 to vector<8x128xf32>
    %34 = arith.mulf %33, %32 : vector<8x128xf32>
    %cst_23 = arith.constant 5.000000e-01 : f32
    %35 = vector.broadcast %cst_23 : f32 to vector<8x128xf32>
    %36 = arith.addf %34, %35 : vector<8x128xf32>
    %37 = vector.extract_strided_slice %36 {offsets = [0, 0], sizes = [1, 128], strides = [1, 1]} : vector<8x128xf32> to vector<1x128xf32>
    %c0_24 = arith.constant 0 : index
    %c0_25 = arith.constant 0 : index
    %38 = vector.load %arg8[%c0_24, %c0_25] : memref<1x128xf32, #tpu.memory_space<vmem>>, vector<1x128xf32>
    tpu.vector_store %arg8[%c0_24, %c0_25], %37 {strides = array<i32>} : memref<1x128xf32, #tpu.memory_space<vmem>>, vector<1x128xf32>,
    return
  }
  func.func @transform_0(%arg0: i32) -> (i32, i32) {
    %c0_i32 = arith.constant 0 : i32
    %c0_i32_0 = arith.constant 0 : i32
    return %c0_i32, %arg0 : i32, i32
  }
  func.func @transform_1(%arg0: i32) -> (i32, i32) {
    %c0_i32 = arith.constant 0 : i32
    %c0_i32_0 = arith.constant 0 : i32
    %c0_i32_1 = arith.constant 0 : i32
    return %c0_i32, %c0_i32_0 : i32, i32
  }
  func.func @transform_2(%arg0: i32) -> (i32, i32) {
    %c0_i32 = arith.constant 0 : i32
    %c0_i32_0 = arith.constant 0 : i32
    %c0_i32_1 = arith.constant 0 : i32
    return %c0_i32, %c0_i32_0 : i32, i32
  }
  func.func @transform_3(%arg0: i32) -> (i32, i32) {
    %c0_i32 = arith.constant 0 : i32
    %c0_i32_0 = arith.constant 0 : i32
    %c0_i32_1 = arith.constant 0 : i32
    return %c0_i32, %c0_i32_0 : i32, i32
  }
  func.func @transform_4(%arg0: i32) -> (i32, i32) {
    %c0_i32 = arith.constant 0 : i32
    %c0_i32_0 = arith.constant 0 : i32
    %c0_i32_1 = arith.constant 0 : i32
    return %c0_i32, %c0_i32_0 : i32, i32
  }
  func.func @transform_5(%arg0: i32) -> (i32, i32) {
    %c0_i32 = arith.constant 0 : i32
    %c0_i32_0 = arith.constant 0 : i32
    %c0_i32_1 = arith.constant 0 : i32
    return %c0_i32, %c0_i32_0 : i32, i32
  }
  func.func @transform_6(%arg0: i32) -> (i32, i32) {
    %c0_i32 = arith.constant 0 : i32
    %c0_i32_0 = arith.constant 0 : i32
    %c0_i32_1 = arith.constant 0 : i32
    return %c0_i32, %c0_i32_0 : i32, i32
  }
  func.func @transform_7(%arg0: i32) -> (i32, i32) {
    %c0_i32 = arith.constant 0 : i32
    %c0_i32_0 = arith.constant 0 : i32
    return %c0_i32, %arg0 : i32, i32
  }
}

</mosaic_0001>

<llo_original>
// kernel: tpu_custom_call.1
$region0: #{tpu_custom_call.1}
  #allocation0 [shape = 'u32[]', space=smem, size = 0x4, offset = 0x4, fixed_abs, tag = 'smem constant byte address 0x4 - core index']
  #allocation1 [shape = 'u32[72,128]{1,0:T(1,128)}', space=vmem, size = 0x9000, scoped, tag = 'internal scratch']
  %s0 = inlined_call_operand.vmem [shape: f32[8,128], index: 0, kind: input, shape index: {}]
  %s1 = inlined_call_operand.vmem [shape: f32[32,8], index: 1, kind: input, shape index: {}]
  %s2 = inlined_call_operand.vmem [shape: f32[32,1], index: 2, kind: input, shape index: {}]
  %s3 = inlined_call_operand.vmem [shape: f32[32,32], index: 3, kind: input, shape index: {}]
  %s4 = inlined_call_operand.vmem [shape: f32[32,1], index: 4, kind: input, shape index: {}]
  %s5 = inlined_call_operand.vmem [shape: f32[8,32], index: 5, kind: input, shape index: {}]
  %s6 = inlined_call_operand.vmem [shape: f32[8,1], index: 6, kind: input, shape index: {}]
  %s7 = inlined_call_operand.hbm [shape: f32[1,128], index: 7, kind: output, shape index: {}]
  %s8 = sld [smem:[#allocation0]]
  $region38: #{tpu_custom_call.1} parent=0
    _
  %s10 = ssub.s32 1, %s8
  %s11 = scalar_select 0, %s10, %s8
  $region1: #{tpu_custom_call.1} parent=0
    #allocation2 [shape = 'u8[512]{0}', space=vmem, size = 0x400, scoped, tag = 'output window, operand 0, single buffered']
    #allocation3 [shape = 's32[1]{0}', space=sflag, size = 0x4, scoped, tag = 'scoped memory for tpu_custom_call.1']
    %12 = vsyncpa [#allocation3], 0
    // Predicated region
    $region2: #{tpu_custom_call.1} parent=1 // pred_check
      _
    $region3: #{tpu_custom_call.1} parent=1 // pred_check_branch
      %14 = sbr.rel (0) target = $region5
    $region4: #{tpu_custom_call.1} parent=1 // pred_region
      _
    $region5: #{tpu_custom_call.1} parent=1 // pred_fallthru
      _
    // Predicated region
    $region6: #{tpu_custom_call.1} parent=1 // pred_check
      _
    $region7: #{tpu_custom_call.1} parent=1 // pred_check_branch
      %16 = sbr.rel (0) target = $region9
    $region8: #{tpu_custom_call.1} parent=1 // pred_region
      _
    $region9: #{tpu_custom_call.1} parent=1 // pred_fallthru
      _
    // Predicated region
    $region10: #{tpu_custom_call.1} parent=1 // pred_check
      _
    $region11: #{tpu_custom_call.1} parent=1 // pred_check_branch
      %18 = sbr.rel (0) target = $region13
    $region12: #{tpu_custom_call.1} parent=1 // pred_region
      _
    $region13: #{tpu_custom_call.1} parent=1 // pred_fallthru
      _
    // Predicated region
    $region14: #{tpu_custom_call.1} parent=1 // pred_check
      _
    $region15: #{tpu_custom_call.1} parent=1 // pred_check_branch
      %20 = sbr.rel (0) target = $region17
    $region16: #{tpu_custom_call.1} parent=1 // pred_region
      _
    $region17: #{tpu_custom_call.1} parent=1 // pred_fallthru
      _
    // Predicated region
    $region18: #{tpu_custom_call.1} parent=1 // pred_check
      _
    $region19: #{tpu_custom_call.1} parent=1 // pred_check_branch
      %22 = sbr.rel (0) target = $region21
    $region20: #{tpu_custom_call.1} parent=1 // pred_region
      _
    $region21: #{tpu_custom_call.1} parent=1 // pred_fallthru
      _
    // Predicated region
    $region22: #{tpu_custom_call.1} parent=1 // pred_check
      _
    $region23: #{tpu_custom_call.1} parent=1 // pred_check_branch
      %24 = sbr.rel (0) target = $region25
    $region24: #{tpu_custom_call.1} parent=1 // pred_region
      _
    $region25: #{tpu_custom_call.1} parent=1 // pred_fallthru
      _
    // Predicated region
    $region26: #{tpu_custom_call.1} parent=1 // pred_check
      _
    $region27: #{tpu_custom_call.1} parent=1 // pred_check_branch
      %26 = sbr.rel (0) target = $region29
    $region28: #{tpu_custom_call.1} parent=1 // pred_region
      _
    $region29: #{tpu_custom_call.1} parent=1 // pred_fallthru
      _
    %v27 = vld [vmem:[%s0] sm:$0xff]
    %v28 = vld [vmem:[%s1] sm:$0xff]
    %v29 = vld [vmem:[%s1 + $0x8] sm:$0xff]
    %v30 = vld [vmem:[%s1 + $0x10] sm:$0xff]
    %v31 = vld [vmem:[%s1 + $0x18] sm:$0xff]
    %v32 = vld [vmem:[%s2] sm:$0xff]
    %v33 = vld [vmem:[%s2 + $0x8] sm:$0xff]
    %v34 = vld [vmem:[%s2 + $0x10] sm:$0xff]
    %v35 = vld [vmem:[%s2 + $0x18] sm:$0xff]
    %37 = vset.pattern.permute.xlu0 0
    %38 = vperm.xlu0 %37, %v32
    %v39 = vpop.permute.xlu0 %38
    %42 = vset.pattern.permute.xlu0 0
    %43 = vperm.xlu0 %42, %v33
    %v44 = vpop.permute.xlu0 %43
    %47 = vset.pattern.permute.xlu0 0
    %48 = vperm.xlu0 %47, %v34
    %v49 = vpop.permute.xlu0 %48
    %52 = vset.pattern.permute.xlu0 0
    %53 = vperm.xlu0 %52, %v35
    %v54 = vpop.permute.xlu0 %53
    %vm56 = vcmask 64512
    %v58 = vsel %vm56, %v28, 0
    %v61 = vsel %vm56, %v29, 0
    %v64 = vsel %vm56, %v30, 0
    %v67 = vsel %vm56, %v31, 0
    %69 = vmatpush.msra.mxu0 0.0
    %70 = vmatpush.msra.mxu0 0.0
    %71 = vmatpush.msra.mxu0 0.0
    %72 = vmatpush.msra.mxu0 0.0
    %73 = vmatpush.msra.mxu0 0.0
    %74 = vmatpush.msra.mxu0 0.0
    %75 = vmatpush.msra.mxu0 0.0
    %76 = vmatpush.msra.mxu0 0.0
    %77 = vmatpush.msra.mxu0 0.0
    %78 = vmatpush.msra.mxu0 0.0
    %79 = vmatpush.msra.mxu0 0.0
    %80 = vmatpush.msra.mxu0 0.0
    %81 = vmatpush.msra.mxu0 0.0
    %82 = vmatpush.msra.mxu0 0.0
    %83 = vmatpush.msra.mxu0 0.0
    %84 = vmatpush.msra.mxu0 %v27
    %85 = vmatmul.f32.gmra.mxu0 %v58
    %v86 = vpop.f32.mrf.mxu0
    %v87 = vadd.f32 %v39, %v86
    %88 = vmatmul.f32.gmra.mxu0 %v61
    %v89 = vpop.f32.mrf.mxu0
    %v90 = vadd.f32 %v44, %v89
    %91 = vmatmul.f32.gmra.mxu0 %v64
    %v92 = vpop.f32.mrf.mxu0
    %v93 = vadd.f32 %v49, %v92
    %94 = vmatmul.f32.gmra.mxu0 %v67
    %v95 = vpop.f32.mrf.mxu0
    %v96 = vadd.f32 %v54, %v95
    %97 = vdwg.mxu0
    %v98 = vmul.f32 %v87, 0.5
    %v99 = vmul.f32 %v90, 0.5
    %v100 = vmul.f32 %v93, 0.5
    %v101 = vmul.f32 %v96, 0.5
    %v102 = vtanh.pop %v98
    %v103 = vtanh.pop %v99
    %v104 = vtanh.pop %v100
    %v105 = vtanh.pop %v101
    %v106 = vmul.f32 %v102, 0.5
    %v107 = vmul.f32 %v103, 0.5
    %v108 = vmul.f32 %v104, 0.5
    %v109 = vmul.f32 %v105, 0.5
    %v110 = vadd.f32 %v106, 0.5
    %v111 = vadd.f32 %v107, 0.5
    %v112 = vadd.f32 %v108, 0.5
    %v113 = vadd.f32 %v109, 0.5
    %v114 = vld [vmem:[%s3] sm:$0xff]
    %v115 = vld [vmem:[%s3 + $0x8] sm:$0xff]
    %v116 = vld [vmem:[%s3 + $0x10] sm:$0xff]
    %v117 = vld [vmem:[%s3 + $0x18] sm:$0xff]
    %v118 = vld [vmem:[%s4] sm:$0xff]
    %v119 = vld [vmem:[%s4 + $0x8] sm:$0xff]
    %v120 = vld [vmem:[%s4 + $0x10] sm:$0xff]
    %v121 = vld [vmem:[%s4 + $0x18] sm:$0xff]
    %123 = vset.pattern.permute.xlu0 0
    %124 = vperm.xlu0 %123, %v118
    %v125 = vpop.permute.xlu0 %124
    %128 = vset.pattern.permute.xlu0 0
    %129 = vperm.xlu0 %128, %v119
    %v130 = vpop.permute.xlu0 %129
    %133 = vset.pattern.permute.xlu0 0
    %134 = vperm.xlu0 %133, %v120
    %v135 = vpop.permute.xlu0 %134
    %138 = vset.pattern.permute.xlu0 0
    %139 = vperm.xlu0 %138, %v121
    %v140 = vpop.permute.xlu0 %139
    %vm142 = vcmask 261120
    %v144 = vsel %vm142, %v114, 0
    %v147 = vsel %vm142, %v115, 0
    %v150 = vsel %vm142, %v116, 0
    %v153 = vsel %vm142, %v117, 0
    %155 = vmatpush.msra.mxu0 0.0
    %156 = vmatpush.msra.mxu0 0.0
    %157 = vmatpush.msra.mxu0 0.0
    %158 = vmatpush.msra.mxu0 0.0
    %159 = vmatpush.msra.mxu0 0.0
    %160 = vmatpush.msra.mxu0 0.0
    %161 = vmatpush.msra.mxu0 0.0
    %162 = vmatpush.msra.mxu0 0.0
    %163 = vmatpush.msra.mxu0 0.0
    %164 = vmatpush.msra.mxu0 0.0
    %165 = vmatpush.msra.mxu0 0.0
    %166 = vmatpush.msra.mxu0 0.0
    %167 = vmatpush.msra.mxu0 %v113
    %168 = vmatpush.msra.mxu0 %v112
    %169 = vmatpush.msra.mxu0 %v111
    %170 = vmatpush.msra.mxu0 %v110
    %171 = vmatmul.f32.gmra.mxu0 %v144
    %v172 = vpop.f32.mrf.mxu0
    %v173 = vadd.f32 %v125, %v172
    %174 = vmatmul.f32.gmra.mxu0 %v147
    %v175 = vpop.f32.mrf.mxu0
    %v176 = vadd.f32 %v130, %v175
    %177 = vmatmul.f32.gmra.mxu0 %v150
    %v178 = vpop.f32.mrf.mxu0
    %v179 = vadd.f32 %v135, %v178
    %180 = vmatmul.f32.gmra.mxu0 %v153
    %v181 = vpop.f32.mrf.mxu0
    %v182 = vadd.f32 %v140, %v181
    %183 = vdwg.mxu0
    %v184 = vmul.f32 %v173, 0.5
    %v185 = vmul.f32 %v176, 0.5
    %v186 = vmul.f32 %v179, 0.5
    %v187 = vmul.f32 %v182, 0.5
    %v188 = vtanh.pop %v184
    %v189 = vtanh.pop %v185
    %v190 = vtanh.pop %v186
    %v191 = vtanh.pop %v187
    %v192 = vmul.f32 %v188, 0.5
    %v193 = vmul.f32 %v189, 0.5
    %v194 = vmul.f32 %v190, 0.5
    %v195 = vmul.f32 %v191, 0.5
    %v196 = vadd.f32 %v192, 0.5
    %v197 = vadd.f32 %v193, 0.5
    %v198 = vadd.f32 %v194, 0.5
    %v199 = vadd.f32 %v195, 0.5
    %v200 = vld [vmem:[%s5] sm:$0xff]
    %v201 = vld [vmem:[%s6] sm:$0xff]
    %203 = vset.pattern.permute.xlu0 0
    %204 = vperm.xlu0 %203, %v201
    %v205 = vpop.permute.xlu0 %204
    %v208 = vsel %vm142, %v200, 0
    %210 = vmatpush.msra.mxu0 0.0
    %211 = vmatpush.msra.mxu0 0.0
    %212 = vmatpush.msra.mxu0 0.0
    %213 = vmatpush.msra.mxu0 0.0
    %214 = vmatpush.msra.mxu0 0.0
    %215 = vmatpush.msra.mxu0 0.0
    %216 = vmatpush.msra.mxu0 0.0
    %217 = vmatpush.msra.mxu0 0.0
    %218 = vmatpush.msra.mxu0 0.0
    %219 = vmatpush.msra.mxu0 0.0
    %220 = vmatpush.msra.mxu0 0.0
    %221 = vmatpush.msra.mxu0 0.0
    %222 = vmatpush.msra.mxu0 %v199
    %223 = vmatpush.msra.mxu0 %v198
    %224 = vmatpush.msra.mxu0 %v197
    %225 = vmatpush.msra.mxu0 %v196
    %226 = vmatmul.f32.gmra.mxu0 %v208
    %v227 = vpop.f32.mrf.mxu0
    %v228 = vadd.f32 %v205, %v227
    %229 = vdwg.mxu0
    %v230 = vmul.f32 %v228, 0.5
    %v231 = vtanh.pop %v230
    %v232 = vmul.f32 %v231, 0.5
    %v233 = vadd.f32 %v232, 0.5
    %234 = vst [vmem:[#allocation2] sm:$0x1] %v233
    // Predicated region
    $region30: #{tpu_custom_call.1} parent=1 // pred_check
      _
    $region31: #{tpu_custom_call.1} parent=1 // pred_check_branch
      %236 = sbr.rel (0) target = $region33
    $region32: #{tpu_custom_call.1} parent=1 // pred_region
      %238 = vsyncadd [#allocation3], 0
      %s240 = sshll.u32 [#allocation2], 4
      %s241 = int_to_ptr.vmem [resolvable:$true] %s240
      %s242 = sshll.u32 %s7, 4
      %s243 = int_to_ptr.hbm [resolvable:$true] %s242
      %245 = dma.vmem_to_hbm [thread:$0]  %s241, 16, %s243, [#allocation3]
    $region33: #{tpu_custom_call.1} parent=1 // pred_fallthru
      _
    // Predicated region
    $region34: #{tpu_custom_call.1} parent=1 // pred_check
      _
    $region35: #{tpu_custom_call.1} parent=1 // pred_check_branch
      %247 = sbr.rel (0) target = $region37
    $region36: #{tpu_custom_call.1} parent=1 // pred_region
      %249 = dma.done [#allocation3], 16
    $region37: #{tpu_custom_call.1} parent=1 // pred_fallthru
      _
    %250 = vsyncpa [#allocation3], 1

</llo_original>
